<compile_context>
chip_gen: v7x
topology: tpu7x:2x2x1
jax: 0.10.0
libtpu: 0.0.40
codegen_flags: <defaults>
</compile_context>

<pallas_src>
import functools

import jax
import jax.numpy as jnp
from jax.experimental import pallas as pl
from jax.experimental.pallas import tpu as pltpu

HIDDEN_STATE_SIZE = 64
MLP_HIDDEN = 128
MAX_TILE_B = 1024          # rows per grid step (multiple of 8)


def _round_up(x, m):
    return -(-x // m) * m


def pred_kernel(x_ref, w1_ref, b1_ref, w2_ref, b2_ref, out_ref):
    cdt = w1_ref.dtype                       # compute dtype (f32 or bf16)
    x = x_ref[...].astype(cdt)               # in-register cast, no HBM pass
    # (TB, 64) @ (64, 256) -> f32 acc -> +bias -> ReLU   (both first layers)
    h = jnp.dot(x, w1_ref[...], preferred_element_type=jnp.float32) + b1_ref[...]
    h = jnp.maximum(h, 0.0)                  # epilogue stays f32 (v5e-safe)
    # (TB, 256) @ (256, out_w) -> +bias                  (block-diag 2nd layers)
    out_ref[...] = (
        jnp.dot(h.astype(cdt), w2_ref[...], preferred_element_type=jnp.float32)
        + b2_ref[...]
    ).astype(out_ref.dtype)


def pack_params(params, actions, *, weight_dtype=jnp.float32, lane_dense=True):
    """Pack the 8 per-head tensors into 2 fused weights + 2 fused f32 biases.

    W1 = [w1p | w1v]                          shape (64, 256)
    W2 = block-diag(w2p, w2v)                 shape (256, out_w)
    out_w = next multiple of 128 (lane-dense slab, unmasked stores) or
            actions+1 (narrow output: ~25x fewer HBM write bytes; wins at
            large B where DMA bytes, not per-step store efficiency, dominate).
    """
    w1p, b1p, w2p, b2p, w1v, b1v, w2v, b2v = params
    if lane_dense:
        out_w = max(128, _round_up(actions + 1, 128))
    else:
        out_w = actions + 1

    w1 = jnp.concatenate([w1p, w1v], axis=1).astype(weight_dtype)    # (64, 256)
    b1 = jnp.concatenate([b1p, b1v], axis=1).astype(jnp.float32)     # (1, 256)

    w2 = jnp.zeros((2 * MLP_HIDDEN, out_w), jnp.float32)
    w2 = w2.at[:MLP_HIDDEN, :actions].set(w2p)
    w2 = w2.at[MLP_HIDDEN:, actions].set(w2v[:, 0])
    w2 = w2.astype(weight_dtype)                                     # (256, out_w)
    b2 = jnp.zeros((1, out_w), jnp.float32)
    b2 = b2.at[:, :actions].set(b2p[0])
    b2 = b2.at[:, actions].set(b2v[0, 0])
    return w1, b1, w2, b2, out_w


def pred_model(x, packed, actions, *, out_dtype=jnp.float32,
               return_padded=False, xla_fallback_below=0):
    """x: (B, 64). Returns (policy (B, actions), value (B,)).

    return_padded=True returns the raw (Bp, out_w) slab + `actions` so the
    consumer can slice/softmax in place (avoids an un-fused XLA re-read of the
    whole slab just to extract actions+1 columns).  Padded rows/columns hold
    garbage/zeros and must be ignored by the consumer.
    xla_fallback_below: batches smaller than this skip Pallas (MCTS-size B).
    """
    w1, b1, w2, b2, out_w = packed
    B, H = x.shape
    assert H == HIDDEN_STATE_SIZE

    if B < xla_fallback_below:
        h = jnp.maximum(
            jnp.dot(x.astype(w1.dtype), w1, preferred_element_type=jnp.float32) + b1, 0.0)
        out = (jnp.dot(h.astype(w2.dtype), w2, preferred_element_type=jnp.float32)
               + b2).astype(out_dtype)
        if return_padded:
            return out, actions
        return out[:, :actions], out[:, actions]

    # Batch tile: as few grid steps as possible, capped at MAX_TILE_B.  For
    # B > MAX_TILE_B force >=2 roughly even steps so v7x's 2nd TC gets work.
    tile_b = min(_round_up(B, 8), MAX_TILE_B)
    if B > MAX_TILE_B:
        tile_b = min(_round_up(pl.cdiv(B, 2), 8), MAX_TILE_B)
    Bp = _round_up(B, tile_b)
    if Bp != B:
        x = jnp.pad(x, ((0, Bp - B), (0, 0)))

    full = lambda arr: pl.BlockSpec(arr.shape, lambda i: (0, 0))

    flops = 2 * Bp * (HIDDEN_STATE_SIZE * 2 * MLP_HIDDEN + 2 * MLP_HIDDEN * out_w)
    bytes_accessed = (x.size * x.dtype.itemsize
                      + sum(a.size * a.dtype.itemsize for a in (w1, b1, w2, b2))
                      + Bp * out_w * jnp.dtype(out_dtype).itemsize)

    out = pl.pallas_call(
        pred_kernel,
        out_shape=jax.ShapeDtypeStruct((Bp, out_w), out_dtype),
        grid_spec=pltpu.PrefetchScalarGridSpec(
            num_scalar_prefetch=0,
            grid=(Bp // tile_b,),
            in_specs=[
                pl.BlockSpec((tile_b, H), lambda i: (i, 0)),   # x tile
                full(w1), full(b1),                            # fused layer 1
                full(w2), full(b2),                            # fused layer 2
            ],
            out_specs=pl.BlockSpec((tile_b, out_w), lambda i: (i, 0)),
        ),
        compiler_params=pltpu.CompilerParams(
            dimension_semantics=("parallel",),
            vmem_limit_bytes=16 * 1024 * 1024),
        cost_estimate=pl.CostEstimate(flops=int(flops), transcendentals=0,
                                      bytes_accessed=int(bytes_accessed)),
    )(x, w1, b1, w2, b2)

    if return_padded:
        return out, actions
    pol = out[:B, :actions]
    val = out[:B, actions]          # .squeeze(1) of the PyTorch forward
    return pol, val


def init_params(key, actions):
    """Deterministic init matching nn.Linear shapes (weights stored transposed)."""
    ks = jax.random.split(key, 8)

    def lin(kw, kb, fan_in, fan_out):
        bound = 1.0 / jnp.sqrt(fan_in)
        w = jax.random.uniform(kw, (fan_in, fan_out), jnp.float32, -bound, bound)
        b = jax.random.uniform(kb, (1, fan_out), jnp.float32, -bound, bound)
        return w, b

    w1p, b1p = lin(ks[0], ks[1], HIDDEN_STATE_SIZE, MLP_HIDDEN)
    w2p, b2p = lin(ks[2], ks[3], MLP_HIDDEN, actions)
    w1v, b1v = lin(ks[4], ks[5], HIDDEN_STATE_SIZE, MLP_HIDDEN)
    w2v, b2v = lin(ks[6], ks[7], MLP_HIDDEN, 1)
    return (w1p, b1p, w2p, b2p, w1v, b1v, w2v, b2v)


def pred_model_ref(x, params):
    w1p, b1p, w2p, b2p, w1v, b1v, w2v, b2v = params
    hp = jnp.maximum(x @ w1p + b1p, 0.0)
    pol = hp @ w2p + b2p
    hv = jnp.maximum(x @ w1v + b1v, 0.0)
    val = hv @ w2v + b2v
    return pol, val[:, 0]


if __name__ == "__main__":
    key = jax.random.PRNGKey(0)
    k_param, k_x1, k_x2 = jax.random.split(key, 3)

    actions = 4
    params = init_params(k_param, actions)

    # --- f32 weights, tiny batch (single grid step), tight tolerance --------
    packed_f32 = pack_params(params, actions, weight_dtype=jnp.float32)
    x_small = jax.random.normal(k_x1, (8, HIDDEN_STATE_SIZE), jnp.float32)
    pol, val = jax.jit(lambda x: pred_model(x, packed_f32, actions))(x_small)
    jax.block_until_ready((pol, val))
    pol_ref, val_ref = pred_model_ref(x_small, params)
    assert pol.shape == (8, actions) and val.shape == (8,)
    assert jnp.allclose(pol, pol_ref, atol=1e-5, rtol=1e-5)
    assert jnp.allclose(val, val_ref, atol=1e-5, rtol=1e-5)

    # --- bf16 weights (v6e/v7x MXU path), padded batch, 2 parallel steps ----
    packed_bf16 = pack_params(params, actions, weight_dtype=jnp.bfloat16)
    x_big = jax.random.normal(k_x2, (1030, HIDDEN_STATE_SIZE), jnp.float32)
    pol2, val2 = jax.jit(lambda x: pred_model(x, packed_bf16, actions))(x_big)
    jax.block_until_ready((pol2, val2))
    pol2_ref, val2_ref = pred_model_ref(x_big, params)
    assert pol2.shape == (1030, actions) and val2.shape == (1030,)
    assert jnp.allclose(pol2, pol2_ref, atol=5e-2, rtol=5e-2)
    assert jnp.allclose(val2, val2_ref, atol=5e-2, rtol=5e-2)

    print("KERNEL_OK")
</pallas_src>

<mosaic_0001>
module attributes {stable_mosaic.version = 11 : i64} {
  func.func @pred_kernel(%arg0: i32, %arg1: memref<8x64xf32, #tpu.memory_space<vmem>>, %arg2: memref<64x256xf32, #tpu.memory_space<vmem>>, %arg3: memref<1x256xf32, #tpu.memory_space<vmem>>, %arg4: memref<256x128xf32, #tpu.memory_space<vmem>>, %arg5: memref<1x128xf32, #tpu.memory_space<vmem>>, %arg6: memref<8x128xf32, #tpu.memory_space<vmem>>) attributes {dimension_semantics = [#tpu.dimension_semantics<parallel>], iteration_bounds = array<i64: 1>, scalar_prefetch = 0 : i64, scratch_operands = 0 : i64, tpu.core_type = #tpu.core_type<tc>, window_params = [{transform_indices = @transform_0, window_bounds = array<i64: 8, 64>}, {pipeline_mode = #tpu.pipeline_mode<synchronous>, transform_indices = @transform_1, window_bounds = array<i64: 64, 256>}, {pipeline_mode = #tpu.pipeline_mode<synchronous>, transform_indices = @transform_2, window_bounds = array<i64: 1, 256>}, {pipeline_mode = #tpu.pipeline_mode<synchronous>, transform_indices = @transform_3, window_bounds = array<i64: 256, 128>}, {pipeline_mode = #tpu.pipeline_mode<synchronous>, transform_indices = @transform_4, window_bounds = array<i64: 1, 128>}, {transform_indices = @transform_5, window_bounds = array<i64: 8, 128>}]} {
    %c0 = arith.constant 0 : index
    %c0_0 = arith.constant 0 : index
    %0 = vector.load %arg1[%c0, %c0_0] : memref<8x64xf32, #tpu.memory_space<vmem>>, vector<8x64xf32>
    %c0_1 = arith.constant 0 : index
    %c0_2 = arith.constant 0 : index
    %1 = vector.load %arg2[%c0_1, %c0_2] : memref<64x256xf32, #tpu.memory_space<vmem>>, vector<64x256xf32>
    %cst = arith.constant dense<0.000000e+00> : vector<8x256xf32>
    %2 = tpu.matmul %0, %1, %cst {dimension_numbers = #tpu.dot_dimension_numbers<[1], [0], [0], [1], [0, 0, 1, 1], [], []>} : vector<8x64xf32>, vector<64x256xf32>, vector<8x256xf32> -> vector<8x256xf32>
    %c0_3 = arith.constant 0 : index
    %c0_4 = arith.constant 0 : index
    %3 = vector.load %arg3[%c0_3, %c0_4] : memref<1x256xf32, #tpu.memory_space<vmem>>, vector<1x256xf32>
    %4 = vector.broadcast %3 : vector<1x256xf32> to vector<8x256xf32>
    %5 = arith.addf %2, %4 : vector<8x256xf32>
    %cst_5 = arith.constant 0.000000e+00 : f32
    %6 = vector.broadcast %cst_5 : f32 to vector<8x256xf32>
    %7 = arith.maximumf %5, %6 : vector<8x256xf32>
    %c0_6 = arith.constant 0 : index
    %c0_7 = arith.constant 0 : index
    %8 = vector.load %arg4[%c0_6, %c0_7] : memref<256x128xf32, #tpu.memory_space<vmem>>, vector<256x128xf32>
    %cst_8 = arith.constant dense<0.000000e+00> : vector<8x128xf32>
    %9 = tpu.matmul %7, %8, %cst_8 {dimension_numbers = #tpu.dot_dimension_numbers<[1], [0], [0], [1], [0, 0, 1, 1], [], []>} : vector<8x256xf32>, vector<256x128xf32>, vector<8x128xf32> -> vector<8x128xf32>
    %c0_9 = arith.constant 0 : index
    %c0_10 = arith.constant 0 : index
    %10 = vector.load %arg5[%c0_9, %c0_10] : memref<1x128xf32, #tpu.memory_space<vmem>>, vector<1x128xf32>
    %11 = vector.broadcast %10 : vector<1x128xf32> to vector<8x128xf32>
    %12 = arith.addf %9, %11 : vector<8x128xf32>
    %c0_11 = arith.constant 0 : index
    %c0_12 = arith.constant 0 : index
    %13 = vector.load %arg6[%c0_11, %c0_12] : memref<8x128xf32, #tpu.memory_space<vmem>>, vector<8x128xf32>
    tpu.vector_store %arg6[%c0_11, %c0_12], %12 {strides = array<i32>} : memref<8x128xf32, #tpu.memory_space<vmem>>, vector<8x128xf32>,
    return
  }
  func.func @transform_0(%arg0: i32) -> (i32, i32) {
    %c0_i32 = arith.constant 0 : i32
    %c0_i32_0 = arith.constant 0 : i32
    return %arg0, %c0_i32 : i32, i32
  }
  func.func @transform_1(%arg0: i32) -> (i32, i32) {
    %c0_i32 = arith.constant 0 : i32
    %c0_i32_0 = arith.constant 0 : i32
    %c0_i32_1 = arith.constant 0 : i32
    return %c0_i32, %c0_i32_0 : i32, i32
  }
  func.func @transform_2(%arg0: i32) -> (i32, i32) {
    %c0_i32 = arith.constant 0 : i32
    %c0_i32_0 = arith.constant 0 : i32
    %c0_i32_1 = arith.constant 0 : i32
    return %c0_i32, %c0_i32_0 : i32, i32
  }
  func.func @transform_3(%arg0: i32) -> (i32, i32) {
    %c0_i32 = arith.constant 0 : i32
    %c0_i32_0 = arith.constant 0 : i32
    %c0_i32_1 = arith.constant 0 : i32
    return %c0_i32, %c0_i32_0 : i32, i32
  }
  func.func @transform_4(%arg0: i32) -> (i32, i32) {
    %c0_i32 = arith.constant 0 : i32
    %c0_i32_0 = arith.constant 0 : i32
    %c0_i32_1 = arith.constant 0 : i32
    return %c0_i32, %c0_i32_0 : i32, i32
  }
  func.func @transform_5(%arg0: i32) -> (i32, i32) {
    %c0_i32 = arith.constant 0 : i32
    %c0_i32_0 = arith.constant 0 : i32
    return %arg0, %c0_i32 : i32, i32
  }
}

</mosaic_0001>

<llo_original>
// kernel: _lambda_.1
$region0: #{_lambda_.1}
  #allocation0 [shape = 'u32[]', space=smem, size = 0x4, offset = 0x4, fixed_abs, tag = 'smem constant byte address 0x4 - core index']
  #allocation1 [shape = 'u32[144,128]{1,0:T(1,128)}', space=vmem, size = 0x12000, scoped, tag = 'internal scratch']
  %s0 = inlined_call_operand.hbm [shape: f32[8,64], index: 0, kind: input, shape index: {}]
  %s1 = inlined_call_operand.hbm [shape: f32[64,256], index: 1, kind: input, shape index: {}]
  %s2 = inlined_call_operand.vmem [shape: f32[1,256], index: 2, kind: input, shape index: {}]
  %s3 = inlined_call_operand.hbm [shape: f32[256,128], index: 3, kind: input, shape index: {}]
  %s4 = inlined_call_operand.vmem [shape: f32[1,128], index: 4, kind: input, shape index: {}]
  %s5 = inlined_call_operand.vmem [shape: f32[8,128], index: 5, kind: output, shape index: {}]
  %s6 = sld [smem:[#allocation0]]
  $region42: #{_lambda_.1} parent=0
    _
  %s8 = ssub.s32 1, %s6
  %s9 = scalar_select 0, %s8, %s6
  $region1: #{_lambda_.1} parent=0
    #allocation2 [shape = 'u8[4096]{0}', space=vmem, size = 0x1000, scoped, tag = 'input window, operand 0, single buffered']
    #allocation3 [shape = 's32[1]{0}', space=sflag, size = 0x4, scoped, tag = 'scoped memory for _lambda_.1']
    #allocation4 [shape = 'u8[65536]{0}', space=vmem, size = 0x10000, scoped, tag = 'input window, operand 1, single buffered']
    #allocation5 [shape = 's32[1]{0}', space=sflag, size = 0x4, scoped, tag = 'scoped memory for _lambda_.1']
    #allocation6 [shape = 'u8[131072]{0}', space=vmem, size = 0x20000, scoped, tag = 'input window, operand 3, single buffered']
    %10 = vsyncpa [#allocation3], 0
    %11 = vsyncpa [#allocation5], 0
    // Predicated region
    $region2: #{_lambda_.1} parent=1 // pred_check
      _
    $region3: #{_lambda_.1} parent=1 // pred_check_branch
      %13 = sbr.rel (0) target = $region5
    $region4: #{_lambda_.1} parent=1 // pred_region
      %s15 = ssub.s32 128, 128
      %16 = vsyncadd [#allocation3], %s15
      %s18 = sshll.u32 [#allocation2], 4
      %s19 = int_to_ptr.vmem [resolvable:$true] %s18
      %21 = dma.hbm_to_vmem [thread:$0]  %s0, 128, %s19, [#allocation3]
    $region5: #{_lambda_.1} parent=1 // pred_fallthru
      _
    // Predicated region
    $region6: #{_lambda_.1} parent=1 // pred_check
      _
    $region7: #{_lambda_.1} parent=1 // pred_check_branch
      %23 = sbr.rel (0) target = $region9
    $region8: #{_lambda_.1} parent=1 // pred_region
      %s25 = ssub.s32 2048, 2048
      %26 = vsyncadd [#allocation5], %s25
      %s27 = sshll.u32 [#allocation4], 4
      %s28 = int_to_ptr.vmem [resolvable:$true] %s27
      %33 = dma.hbm_to_vmem [thread:$0]  %s1, 2048, %s28, [#allocation5], 256, 256, 16
    $region9: #{_lambda_.1} parent=1 // pred_fallthru
      _
    // Predicated region
    $region10: #{_lambda_.1} parent=1 // pred_check
      _
    $region11: #{_lambda_.1} parent=1 // pred_check_branch
      %35 = sbr.rel (0) target = $region13
    $region12: #{_lambda_.1} parent=1 // pred_region
      _
    $region13: #{_lambda_.1} parent=1 // pred_fallthru
      _
    // Predicated region
    $region14: #{_lambda_.1} parent=1 // pred_check
      _
    $region15: #{_lambda_.1} parent=1 // pred_check_branch
      %37 = sbr.rel (0) target = $region17
    $region16: #{_lambda_.1} parent=1 // pred_region
      %s39 = ssub.s32 4096, 4096
      %40 = vsyncadd [#allocation5], %s39
      %s41 = sshll.u32 [#allocation6], 4
      %s42 = int_to_ptr.vmem [resolvable:$true] %s41
      %47 = dma.hbm_to_vmem [thread:$0]  %s3, 4096, %s42, [#allocation5], 128, 128, 8
    $region17: #{_lambda_.1} parent=1 // pred_fallthru
      _
    // Predicated region
    $region18: #{_lambda_.1} parent=1 // pred_check
      _
    $region19: #{_lambda_.1} parent=1 // pred_check_branch
      %49 = sbr.rel (0) target = $region21
    $region20: #{_lambda_.1} parent=1 // pred_region
      _
    $region21: #{_lambda_.1} parent=1 // pred_fallthru
      _
    // Predicated region
    $region22: #{_lambda_.1} parent=1 // pred_check
      _
    $region23: #{_lambda_.1} parent=1 // pred_check_branch
      %51 = sbr.rel (0) target = $region25
    $region24: #{_lambda_.1} parent=1 // pred_region
      %52 = dma.done [#allocation3], 128
    $region25: #{_lambda_.1} parent=1 // pred_fallthru
      _
    // Predicated region
    $region26: #{_lambda_.1} parent=1 // pred_check
      _
    $region27: #{_lambda_.1} parent=1 // pred_check_branch
      %54 = sbr.rel (0) target = $region29
    $region28: #{_lambda_.1} parent=1 // pred_region
      %55 = dma.done [#allocation5], 2048
    $region29: #{_lambda_.1} parent=1 // pred_fallthru
      _
    // Predicated region
    $region30: #{_lambda_.1} parent=1 // pred_check
      _
    $region31: #{_lambda_.1} parent=1 // pred_check_branch
      %57 = sbr.rel (0) target = $region33
    $region32: #{_lambda_.1} parent=1 // pred_region
      %58 = dma.done [#allocation5], 4096
    $region33: #{_lambda_.1} parent=1 // pred_fallthru
      _
    %v59 = vld [vmem:[#allocation2] sm:$0xff]
    %v60 = vld [vmem:[#allocation4] sm:$0xff]
    %v61 = vld [vmem:[#allocation4 + $0x8] sm:$0xff]
    %v62 = vld [vmem:[#allocation4 + $0x10] sm:$0xff]
    %v63 = vld [vmem:[#allocation4 + $0x18] sm:$0xff]
    %v64 = vld [vmem:[#allocation4 + $0x20] sm:$0xff]
    %v65 = vld [vmem:[#allocation4 + $0x28] sm:$0xff]
    %v66 = vld [vmem:[#allocation4 + $0x30] sm:$0xff]
    %v67 = vld [vmem:[#allocation4 + $0x38] sm:$0xff]
    %v68 = vld [vmem:[#allocation4 + $0x40] sm:$0xff]
    %v69 = vld [vmem:[#allocation4 + $0x48] sm:$0xff]
    %v70 = vld [vmem:[#allocation4 + $0x50] sm:$0xff]
    %v71 = vld [vmem:[#allocation4 + $0x58] sm:$0xff]
    %v72 = vld [vmem:[#allocation4 + $0x60] sm:$0xff]
    %v73 = vld [vmem:[#allocation4 + $0x68] sm:$0xff]
    %v74 = vld [vmem:[#allocation4 + $0x70] sm:$0xff]
    %v75 = vld [vmem:[#allocation4 + $0x78] sm:$0xff]
    %v76 = vld [vmem:[%s2] sm:$0x3]
    %v78 = vlaneseq
    %v79 = vshrl.u32 %v78, 7
    %v80 = vsub.s32 0, %v79
    %v81 = vrot.slane %v76, %v80
    %v82 = vlaneseq
    %v83 = vshrl.u32 %v82, 7
    %v84 = vsub.s32 1, %v83
    %v85 = vrot.slane %v76, %v84
    %vm88 = vcmask 523264
    %v90 = vsel %vm88, %v59, 0
    %92 = vmatprep.subr.mxu0 %v61
    %93 = vmatpush1.msra.mxu0 %v60
    %94 = vmatprep.subr.mxu0 %v63
    %95 = vmatpush1.msra.mxu0 %v62
    %96 = vmatprep.subr.mxu0 %v65
    %97 = vmatpush1.msra.mxu0 %v64
    %98 = vmatprep.subr.mxu0 %v67
    %99 = vmatpush1.msra.mxu0 %v66
    %100 = vmatprep.subr.mxu0 %v69
    %101 = vmatpush1.msra.mxu0 %v68
    %102 = vmatprep.subr.mxu0 %v71
    %103 = vmatpush1.msra.mxu0 %v70
    %104 = vmatprep.subr.mxu0 %v73
    %105 = vmatpush1.msra.mxu0 %v72
    %106 = vmatprep.subr.mxu0 %v75
    %107 = vmatpush1.msra.mxu0 %v74
    %108 = vmatprep.subr.mxu0 0.0
    %109 = vmatpush1.msra.mxu0 0.0
    %110 = vmatprep.subr.mxu0 0.0
    %111 = vmatpush1.msra.mxu0 0.0
    %112 = vmatprep.subr.mxu0 0.0
    %113 = vmatpush1.msra.mxu0 0.0
    %114 = vmatprep.subr.mxu0 0.0
    %115 = vmatpush1.msra.mxu0 0.0
    %116 = vmatprep.subr.mxu0 0.0
    %117 = vmatpush1.msra.mxu0 0.0
    %118 = vmatprep.subr.mxu0 0.0
    %119 = vmatpush1.msra.mxu0 0.0
    %120 = vmatprep.subr.mxu0 0.0
    %121 = vmatpush1.msra.mxu0 0.0
    %122 = vmatprep.subr.mxu0 0.0
    %123 = vmatpush1.msra.mxu0 0.0
    %124 = vmatprep.subr.mxu0 0.0
    %125 = vmatpush1.msra.mxu0 0.0
    %126 = vmatprep.subr.mxu0 0.0
    %127 = vmatpush1.msra.mxu0 0.0
    %128 = vmatprep.subr.mxu0 0.0
    %129 = vmatpush1.msra.mxu0 0.0
    %130 = vmatprep.subr.mxu0 0.0
    %131 = vmatpush1.msra.mxu0 0.0
    %132 = vmatprep.subr.mxu0 0.0
    %133 = vmatpush1.msra.mxu0 0.0
    %134 = vmatprep.subr.mxu0 0.0
    %135 = vmatpush1.msra.mxu0 0.0
    %136 = vmatprep.subr.mxu0 0.0
    %137 = vmatpush1.msra.mxu0 0.0
    %138 = vmatprep.subr.mxu0 0.0
    %139 = vmatpush1.msra.mxu0 0.0
    %140 = vmatprep.subr.mxu0 0.0
    %141 = vmatpush1.msra.mxu0 0.0
    %142 = vmatprep.subr.mxu0 0.0
    %143 = vmatpush1.msra.mxu0 0.0
    %144 = vmatprep.subr.mxu0 0.0
    %145 = vmatpush1.msra.mxu0 0.0
    %146 = vmatprep.subr.mxu0 0.0
    %147 = vmatpush1.msra.mxu0 0.0
    %148 = vmatprep.subr.mxu0 0.0
    %149 = vmatpush1.msra.mxu0 0.0
    %150 = vmatprep.subr.mxu0 0.0
    %151 = vmatpush1.msra.mxu0 0.0
    %152 = vmatprep.subr.mxu0 0.0
    %153 = vmatpush1.msra.mxu0 0.0
    %154 = vmatprep.subr.mxu0 0.0
    %155 = vmatpush1.msra.mxu0 0.0
    %156 = vmatprep.mubr.f32.mxu0 0.0
    %157 = vmatmul.mubr.f32.gmra.mrb[0].mxu0 %v90
    %v158 = vpop.f32.mrb[0].mxu0
    %v159 = vadd.f32 %v81, %v158
    %v160 = vpop.f32.mrb[0].mxu0
    %v161 = vadd.f32 %v85, %v160
    %162 = vdwg.mxu0
    %v163 = vmax.f32 %v159, 0.0
    %v164 = vmax.f32 %v161, 0.0
    %v165 = vld [vmem:[#allocation6] sm:$0xff]
    %v166 = vld [vmem:[#allocation6 + $0x8] sm:$0xff]
    %v167 = vld [vmem:[#allocation6 + $0x10] sm:$0xff]
    %v168 = vld [vmem:[#allocation6 + $0x18] sm:$0xff]
    %v169 = vld [vmem:[#allocation6 + $0x20] sm:$0xff]
    %v170 = vld [vmem:[#allocation6 + $0x28] sm:$0xff]
    %v171 = vld [vmem:[#allocation6 + $0x30] sm:$0xff]
    %v172 = vld [vmem:[#allocation6 + $0x38] sm:$0xff]
    %v173 = vld [vmem:[#allocation6 + $0x40] sm:$0xff]
    %v174 = vld [vmem:[#allocation6 + $0x48] sm:$0xff]
    %v175 = vld [vmem:[#allocation6 + $0x50] sm:$0xff]
    %v176 = vld [vmem:[#allocation6 + $0x58] sm:$0xff]
    %v177 = vld [vmem:[#allocation6 + $0x60] sm:$0xff]
    %v178 = vld [vmem:[#allocation6 + $0x68] sm:$0xff]
    %v179 = vld [vmem:[#allocation6 + $0x70] sm:$0xff]
    %v180 = vld [vmem:[#allocation6 + $0x78] sm:$0xff]
    %v181 = vld [vmem:[#allocation6 + $0x80] sm:$0xff]
    %v182 = vld [vmem:[#allocation6 + $0x88] sm:$0xff]
    %v183 = vld [vmem:[#allocation6 + $0x90] sm:$0xff]
    %v184 = vld [vmem:[#allocation6 + $0x98] sm:$0xff]
    %v185 = vld [vmem:[#allocation6 + $0xa0] sm:$0xff]
    %v186 = vld [vmem:[#allocation6 + $0xa8] sm:$0xff]
    %v187 = vld [vmem:[#allocation6 + $0xb0] sm:$0xff]
    %v188 = vld [vmem:[#allocation6 + $0xb8] sm:$0xff]
    %v189 = vld [vmem:[#allocation6 + $0xc0] sm:$0xff]
    %v190 = vld [vmem:[#allocation6 + $0xc8] sm:$0xff]
    %v191 = vld [vmem:[#allocation6 + $0xd0] sm:$0xff]
    %v192 = vld [vmem:[#allocation6 + $0xd8] sm:$0xff]
    %v193 = vld [vmem:[#allocation6 + $0xe0] sm:$0xff]
    %v194 = vld [vmem:[#allocation6 + $0xe8] sm:$0xff]
    %v195 = vld [vmem:[#allocation6 + $0xf0] sm:$0xff]
    %v196 = vld [vmem:[#allocation6 + $0xf8] sm:$0xff]
    %v197 = vld [vmem:[%s4] sm:$0x1]
    %v199 = vlaneseq
    %v200 = vshrl.u32 %v199, 7
    %v201 = vsub.s32 0, %v200
    %v202 = vrot.slane %v197, %v201
    %204 = vmatprep.subr.mxu0 0.0
    %205 = vmatpush1.msra.mxu0 %v165
    %206 = vmatprep.subr.mxu0 0.0
    %207 = vmatpush1.msra.mxu0 %v166
    %208 = vmatprep.subr.mxu0 0.0
    %209 = vmatpush1.msra.mxu0 %v167
    %210 = vmatprep.subr.mxu0 0.0
    %211 = vmatpush1.msra.mxu0 %v168
    %212 = vmatprep.subr.mxu0 0.0
    %213 = vmatpush1.msra.mxu0 %v169
    %214 = vmatprep.subr.mxu0 0.0
    %215 = vmatpush1.msra.mxu0 %v170
    %216 = vmatprep.subr.mxu0 0.0
    %217 = vmatpush1.msra.mxu0 %v171
    %218 = vmatprep.subr.mxu0 0.0
    %219 = vmatpush1.msra.mxu0 %v172
    %220 = vmatprep.subr.mxu0 0.0
    %221 = vmatpush1.msra.mxu0 %v173
    %222 = vmatprep.subr.mxu0 0.0
    %223 = vmatpush1.msra.mxu0 %v174
    %224 = vmatprep.subr.mxu0 0.0
    %225 = vmatpush1.msra.mxu0 %v175
    %226 = vmatprep.subr.mxu0 0.0
    %227 = vmatpush1.msra.mxu0 %v176
    %228 = vmatprep.subr.mxu0 0.0
    %229 = vmatpush1.msra.mxu0 %v177
    %230 = vmatprep.subr.mxu0 0.0
    %231 = vmatpush1.msra.mxu0 %v178
    %232 = vmatprep.subr.mxu0 0.0
    %233 = vmatpush1.msra.mxu0 %v179
    %234 = vmatprep.subr.mxu0 0.0
    %235 = vmatpush1.msra.mxu0 %v180
    %236 = vmatprep.subr.mxu0 0.0
    %237 = vmatpush1.msra.mxu0 %v181
    %238 = vmatprep.subr.mxu0 0.0
    %239 = vmatpush1.msra.mxu0 %v182
    %240 = vmatprep.subr.mxu0 0.0
    %241 = vmatpush1.msra.mxu0 %v183
    %242 = vmatprep.subr.mxu0 0.0
    %243 = vmatpush1.msra.mxu0 %v184
    %244 = vmatprep.subr.mxu0 0.0
    %245 = vmatpush1.msra.mxu0 %v185
    %246 = vmatprep.subr.mxu0 0.0
    %247 = vmatpush1.msra.mxu0 %v186
    %248 = vmatprep.subr.mxu0 0.0
    %249 = vmatpush1.msra.mxu0 %v187
    %250 = vmatprep.subr.mxu0 0.0
    %251 = vmatpush1.msra.mxu0 %v188
    %252 = vmatprep.subr.mxu0 0.0
    %253 = vmatpush1.msra.mxu0 %v189
    %254 = vmatprep.subr.mxu0 0.0
    %255 = vmatpush1.msra.mxu0 %v190
    %256 = vmatprep.subr.mxu0 0.0
    %257 = vmatpush1.msra.mxu0 %v191
    %258 = vmatprep.subr.mxu0 0.0
    %259 = vmatpush1.msra.mxu0 %v192
    %260 = vmatprep.subr.mxu0 0.0
    %261 = vmatpush1.msra.mxu0 %v193
    %262 = vmatprep.subr.mxu0 0.0
    %263 = vmatpush1.msra.mxu0 %v194
    %264 = vmatprep.subr.mxu0 0.0
    %265 = vmatpush1.msra.mxu0 %v195
    %266 = vmatprep.subr.mxu0 0.0
    %267 = vmatpush1.msra.mxu0 %v196
    %268 = vmatprep.mubr.f32.mxu0 %v164
    %269 = vmatmul.mubr.f32.gmra.mrb[0].mxu0 %v163
    %v270 = vpop.f32.mrb[0].mxu0
    %v271 = vadd.f32 %v202, %v270
    %v272 = vpop.f32.mrb[0].mxu0
    %273 = vdwg.mxu0
    %274 = vst [vmem:[%s5] sm:$0xff] %v271
    // Predicated region
    $region34: #{_lambda_.1} parent=1 // pred_check
      _
    $region35: #{_lambda_.1} parent=1 // pred_check_branch
      %276 = sbr.rel (0) target = $region37
    $region36: #{_lambda_.1} parent=1 // pred_region
      _
    $region37: #{_lambda_.1} parent=1 // pred_fallthru
      _
    // Predicated region
    $region38: #{_lambda_.1} parent=1 // pred_check
      _
    $region39: #{_lambda_.1} parent=1 // pred_check_branch
      %278 = sbr.rel (0) target = $region41
    $region40: #{_lambda_.1} parent=1 // pred_region
      _
    $region41: #{_lambda_.1} parent=1 // pred_fallthru
      _
    %279 = vsyncpa [#allocation3], 1
    %280 = vsyncpa [#allocation5], 1

</llo_original>
